<compile_context>
chip_gen: v5e
topology: v5e:2x2
jax: 0.10.0
libtpu: 0.0.40
codegen_flags: <defaults>
</compile_context>

<pallas_src>
import jax
import jax.numpy as jnp
from jax.experimental import pallas as pl
from jax.experimental.pallas import tpu as pltpu

_LANE = 128
_MIB = 1 << 20
_FUSED_SLAB_LIMIT = 4 * _MIB      # full (C, HW) slab bytes above which we tile HW
_TILE_BUDGET = 16 * _MIB          # target footprint for ~4 double-buffered tiles


# ---------------------------------------------------------------------------
# Fused single-pass kernel (small spatial slabs).
# ---------------------------------------------------------------------------
def _ca_fused_kernel(x_ref, w1_ref, b1_ref, w2_ref, b2_ref, o_ref):
    # x_ref: (1, C, HW); w1: (Cr, C); b1: (Cr, 1); w2: (C, Cr); b2: (C, 1)
    x = x_ref[0]                                                      # (C, HW) native dtype
    # AdaptiveAvgPool2d(1): mean over spatial positions, accumulated in f32.
    pooled = jnp.mean(x.astype(jnp.float32), axis=-1, keepdims=True)  # (C, 1)
    # 1x1 convs as tiny matvecs; FLOPs are negligible on this small-slab path.
    h = jnp.dot(w1_ref[...], pooled,
                preferred_element_type=jnp.float32) + b1_ref[...]     # (Cr, 1)
    h = jnp.maximum(h, 0.0)
    a = jnp.dot(w2_ref[...], h,
                preferred_element_type=jnp.float32) + b2_ref[...]     # (C, 1)
    a = jax.nn.sigmoid(a)
    # Broadcast-scale in the native dtype (no f32 copy of the big tile).
    o_ref[0] = x * a.astype(x.dtype)


def _ca_fused(x, w1, b1, w2, b2):
    N, C, HW = x.shape
    Cr = w1.shape[0]
    slab = C * HW * jnp.dtype(x.dtype).itemsize
    vmem_limit = int(min(100 * _MIB, max(16 * _MIB, 4 * slab + 2 * _MIB)))
    return pl.pallas_call(
        _ca_fused_kernel,
        out_shape=jax.ShapeDtypeStruct((N, C, HW), x.dtype),
        grid_spec=pltpu.PrefetchScalarGridSpec(
            num_scalar_prefetch=0,
            grid=(N,),
            in_specs=[
                pl.BlockSpec((1, C, HW), lambda n: (n, 0, 0)),
                pl.BlockSpec((Cr, C), lambda n: (0, 0)),
                pl.BlockSpec((Cr, 1), lambda n: (0, 0)),
                pl.BlockSpec((C, Cr), lambda n: (0, 0)),
                pl.BlockSpec((C, 1), lambda n: (0, 0)),
            ],
            out_specs=pl.BlockSpec((1, C, HW), lambda n: (n, 0, 0)),
        ),
        compiler_params=pltpu.CompilerParams(
            dimension_semantics=("parallel",),
            vmem_limit_bytes=vmem_limit),
    )(x, w1, b1.reshape(Cr, 1), w2, b2.reshape(C, 1))


# ---------------------------------------------------------------------------
# Two-pass path (large spatial slabs): pooling kernel + scale kernel.
# ---------------------------------------------------------------------------
def _choose_hw_tile(HW, C, itemsize, max_hw_tile=None):
    """Largest multiple-of-128 divisor of HW such that ~4 double-buffered
    (C, T) tiles stay under the VMEM budget.  Falls back to full HW when HW
    is not a multiple of 128 (small/odd spatial sizes)."""
    if HW % _LANE != 0:
        return HW
    cap = min(HW, 2048 if max_hw_tile is None else max(max_hw_tile, _LANE))
    bytes_per_lane = 4 * C * itemsize          # 2x in + 2x out buffers per lane
    cap = min(cap, max(_LANE, (_TILE_BUDGET // bytes_per_lane) // _LANE * _LANE))
    t = (cap // _LANE) * _LANE
    while t >= _LANE:
        if HW % t == 0:
            return t
        t -= _LANE
    return HW


def _pool_kernel(x_ref, sum_ref, acc_ref):
    # x_ref: (1, C, T); sum_ref: (1, C, 1); acc_ref: (C, 1) f32 scratch.
    t = pl.program_id(1)

    @pl.when(t == 0)
    def _():
        acc_ref[...] = jnp.zeros_like(acc_ref)

    x = x_ref[0].astype(jnp.float32)                          # (C, T)
    acc_ref[...] += jnp.sum(x, axis=-1, keepdims=True)        # (C, 1)

    @pl.when(t == pl.num_programs(1) - 1)
    def _():
        sum_ref[0] = acc_ref[...]


def _scale_kernel(x_ref, a_ref, o_ref):
    # x_ref/o_ref: (1, C, T) lane-dense (T multiple of 128); a_ref: (1, C, 1).
    # Native-dtype multiply; attention broadcasts over the lane (spatial) axis.
    o_ref[...] = x_ref[...] * a_ref[...]


def _ca_two_pass(x, w1, b1, w2, b2, max_hw_tile=None):
    N, C, HW = x.shape
    itemsize = jnp.dtype(x.dtype).itemsize
    T = _choose_hw_tile(HW, C, itemsize, max_hw_tile)
    n_t = HW // T
    tile_bytes = C * T * itemsize

    # ---- pass 1: per-channel spatial sums (reduction over the HW grid axis) ----
    pool_vmem = int(min(100 * _MIB, max(16 * _MIB, 2 * tile_bytes + 2 * _MIB)))
    sums = pl.pallas_call(
        _pool_kernel,
        out_shape=jax.ShapeDtypeStruct((N, C, 1), jnp.float32),
        grid_spec=pltpu.PrefetchScalarGridSpec(
            num_scalar_prefetch=0,
            grid=(N, n_t),
            in_specs=[pl.BlockSpec((1, C, T), lambda n, t: (n, 0, t))],
            out_specs=pl.BlockSpec((1, C, 1), lambda n, t: (n, 0, 0)),
            scratch_shapes=[pltpu.VMEM((C, 1), jnp.float32)],
        ),
        compiler_params=pltpu.CompilerParams(
            dimension_semantics=("parallel", "arbitrary"),
            vmem_limit_bytes=pool_vmem),
    )(x)

    # ---- FCs: batched, lane-major (N, C) @ (C, Cr) matmuls in plain JAX ----
    pooled = sums[:, :, 0] * (1.0 / HW)                       # (N, C) f32
    h = jnp.maximum(pooled @ w1.T + b1[None, :], 0.0)         # (N, Cr)
    a = jax.nn.sigmoid(h @ w2.T + b2[None, :])                # (N, C)
    a = a.astype(x.dtype).reshape(N, C, 1)

    # ---- pass 2: lane-dense broadcast scale over an (N, HW//T) grid ----
    scale_vmem = int(min(100 * _MIB, max(16 * _MIB, 4 * tile_bytes + 2 * _MIB)))
    out = pl.pallas_call(
        _scale_kernel,
        out_shape=jax.ShapeDtypeStruct((N, C, HW), x.dtype),
        grid_spec=pltpu.PrefetchScalarGridSpec(
            num_scalar_prefetch=0,
            grid=(N, n_t),
            in_specs=[
                pl.BlockSpec((1, C, T), lambda n, t: (n, 0, t)),
                pl.BlockSpec((1, C, 1), lambda n, t: (n, 0, 0)),
            ],
            out_specs=pl.BlockSpec((1, C, T), lambda n, t: (n, 0, t)),
        ),
        compiler_params=pltpu.CompilerParams(
            dimension_semantics=("parallel", "parallel"),
            vmem_limit_bytes=scale_vmem),
    )(x, a)
    return out


# ---------------------------------------------------------------------------
# Public wrapper + pure-JAX reference.
# ---------------------------------------------------------------------------
def ca_layer(x_nchw, w1, b1, w2, b2, *, force_two_pass=False, max_hw_tile=None):
    """x_nchw: (N, C, H, W). Returns same shape/dtype as x_nchw."""
    N, C, H, W = x_nchw.shape
    HW = H * W
    x = x_nchw.reshape(N, C, HW)
    slab_bytes = C * HW * jnp.dtype(x.dtype).itemsize
    if force_two_pass or slab_bytes > _FUSED_SLAB_LIMIT:
        out = _ca_two_pass(x, w1, b1, w2, b2, max_hw_tile=max_hw_tile)
    else:
        out = _ca_fused(x, w1, b1, w2, b2)
    return out.reshape(N, C, H, W)


def ca_layer_ref(x_nchw, w1, b1, w2, b2):
    """Pure-JAX reference matching the PyTorch forward."""
    pooled = jnp.mean(x_nchw.astype(jnp.float32), axis=(2, 3))        # (N, C)
    h = jnp.maximum(pooled @ w1.T + b1, 0.0)                          # (N, Cr)
    a = jax.nn.sigmoid(h @ w2.T + b2)                                 # (N, C)
    return (x_nchw.astype(jnp.float32) * a[:, :, None, None]).astype(x_nchw.dtype)


if __name__ == "__main__":
    N, C, H, W = 2, 64, 16, 16
    reduction = 16
    Cr = C // reduction

    key = jax.random.PRNGKey(0)
    kx, k1, kb1, k2, kb2 = jax.random.split(key, 5)

    x = jax.random.normal(kx, (N, C, H, W), dtype=jnp.float32)
    # Conv2d 1x1 kernels flattened to matmul weights.
    w1 = jax.random.normal(k1, (Cr, C), dtype=jnp.float32) * 0.1   # (Cr, C, 1, 1)
    b1 = jax.random.normal(kb1, (Cr,), dtype=jnp.float32) * 0.1
    w2 = jax.random.normal(k2, (C, Cr), dtype=jnp.float32) * 0.1   # (C, Cr, 1, 1)
    b2 = jax.random.normal(kb2, (C,), dtype=jnp.float32) * 0.1

    ref = ca_layer_ref(x, w1, b1, w2, b2)

    # Small slab -> fused single-pass kernel.
    out_fused = jax.block_until_ready(ca_layer(x, w1, b1, w2, b2))
    assert out_fused.shape == x.shape and out_fused.dtype == x.dtype
    assert jnp.allclose(out_fused, ref, atol=1e-5, rtol=1e-5)

    # Force the tiled two-pass path (pool kernel + scale kernel) with a small
    # HW tile so the cross-tile pooling accumulation is exercised.
    out_tiled = jax.block_until_ready(
        ca_layer(x, w1, b1, w2, b2, force_two_pass=True, max_hw_tile=128))
    assert out_tiled.shape == x.shape and out_tiled.dtype == x.dtype
    assert jnp.allclose(out_tiled, ref, atol=1e-5, rtol=1e-5)

    print("KERNEL_OK")
</pallas_src>

<mosaic_0001>
module attributes {stable_mosaic.version = 11 : i64} {
  func.func @_ca_fused_kernel(%arg0: i32, %arg1: memref<1x64x256xf32, #tpu.memory_space<vmem>>, %arg2: memref<4x64xf32, #tpu.memory_space<vmem>>, %arg3: memref<4x1xf32, #tpu.memory_space<vmem>>, %arg4: memref<64x4xf32, #tpu.memory_space<vmem>>, %arg5: memref<64x1xf32, #tpu.memory_space<vmem>>, %arg6: memref<1x64x256xf32, #tpu.memory_space<vmem>>) attributes {dimension_semantics = [#tpu.dimension_semantics<parallel>], iteration_bounds = array<i64: 2>, scalar_prefetch = 0 : i64, scratch_operands = 0 : i64, tpu.core_type = #tpu.core_type<tc>, window_params = [{transform_indices = @transform_0, window_bounds = array<i64: 1, 64, 256>}, {pipeline_mode = #tpu.pipeline_mode<synchronous>, transform_indices = @transform_1, window_bounds = array<i64: 4, 64>}, {pipeline_mode = #tpu.pipeline_mode<synchronous>, transform_indices = @transform_2, window_bounds = array<i64: 4, 1>}, {pipeline_mode = #tpu.pipeline_mode<synchronous>, transform_indices = @transform_3, window_bounds = array<i64: 64, 4>}, {pipeline_mode = #tpu.pipeline_mode<synchronous>, transform_indices = @transform_4, window_bounds = array<i64: 64, 1>}, {transform_indices = @transform_5, window_bounds = array<i64: 1, 64, 256>}]} {
    %c0 = arith.constant 0 : index
    %c0_0 = arith.constant 0 : index
    %c0_1 = arith.constant 0 : index
    %0 = vector.load %arg1[%c0, %c0_0, %c0_1] : memref<1x64x256xf32, #tpu.memory_space<vmem>>, vector<1x64x256xf32>
    %1 = vector.shape_cast %0 : vector<1x64x256xf32> to vector<64x256xf32>
    %cst = arith.constant dense<0.000000e+00> : vector<64xf32>
    %2 = vector.multi_reduction <add>, %1, %cst [1] : vector<64x256xf32> to vector<64xf32>
    %3 = vector.shape_cast %2 : vector<64xf32> to vector<64x1xf32>
    %cst_2 = arith.constant 2.560000e+02 : f32
    %4 = vector.broadcast %cst_2 : f32 to vector<64x1xf32>
    %5 = arith.divf %3, %4 : vector<64x1xf32>
    %c0_3 = arith.constant 0 : index
    %c0_4 = arith.constant 0 : index
    %6 = vector.load %arg2[%c0_3, %c0_4] : memref<4x64xf32, #tpu.memory_space<vmem>>, vector<4x64xf32>
    %cst_5 = arith.constant dense<0.000000e+00> : vector<4x1xf32>
    %7 = tpu.matmul %6, %5, %cst_5 {dimension_numbers = #tpu.dot_dimension_numbers<[1], [0], [0], [1], [0, 0, 1, 1], [], []>} : vector<4x64xf32>, vector<64x1xf32>, vector<4x1xf32> -> vector<4x1xf32>
    %c0_6 = arith.constant 0 : index
    %c0_7 = arith.constant 0 : index
    %8 = vector.load %arg3[%c0_6, %c0_7] : memref<4x1xf32, #tpu.memory_space<vmem>>, vector<4x1xf32>
    %9 = arith.addf %7, %8 : vector<4x1xf32>
    %cst_8 = arith.constant 0.000000e+00 : f32
    %10 = vector.broadcast %cst_8 : f32 to vector<4x1xf32>
    %11 = arith.maximumf %9, %10 : vector<4x1xf32>
    %c0_9 = arith.constant 0 : index
    %c0_10 = arith.constant 0 : index
    %12 = vector.load %arg4[%c0_9, %c0_10] : memref<64x4xf32, #tpu.memory_space<vmem>>, vector<64x4xf32>
    %cst_11 = arith.constant dense<0.000000e+00> : vector<64x1xf32>
    %13 = tpu.matmul %12, %11, %cst_11 {dimension_numbers = #tpu.dot_dimension_numbers<[1], [0], [0], [1], [0, 0, 1, 1], [], []>} : vector<64x4xf32>, vector<4x1xf32>, vector<64x1xf32> -> vector<64x1xf32>
    %c0_12 = arith.constant 0 : index
    %c0_13 = arith.constant 0 : index
    %14 = vector.load %arg5[%c0_12, %c0_13] : memref<64x1xf32, #tpu.memory_space<vmem>>, vector<64x1xf32>
    %15 = arith.addf %13, %14 : vector<64x1xf32>
    %16 = arith.negf %15 : vector<64x1xf32>
    %17 = math.exp %16 : vector<64x1xf32>
    %cst_14 = arith.constant 1.000000e+00 : f32
    %18 = vector.broadcast %cst_14 : f32 to vector<64x1xf32>
    %19 = arith.addf %18, %17 : vector<64x1xf32>
    %20 = arith.divf %18, %19 : vector<64x1xf32>
    %21 = vector.broadcast %20 : vector<64x1xf32> to vector<64x256xf32>
    %22 = arith.mulf %1, %21 : vector<64x256xf32>
    %c0_15 = arith.constant 0 : index
    %c0_16 = arith.constant 0 : index
    %c0_17 = arith.constant 0 : index
    %23 = vector.load %arg6[%c0_15, %c0_16, %c0_17] : memref<1x64x256xf32, #tpu.memory_space<vmem>>, vector<1x64x256xf32>
    %24 = vector.shape_cast %23 : vector<1x64x256xf32> to vector<64x256xf32>
    %25 = vector.shape_cast %22 : vector<64x256xf32> to vector<1x64x256xf32>
    tpu.vector_store %arg6[%c0_15, %c0_16, %c0_17], %25 {strides = array<i32>} : memref<1x64x256xf32, #tpu.memory_space<vmem>>, vector<1x64x256xf32>,
    return
  }
  func.func @transform_0(%arg0: i32) -> (i32, i32, i32) {
    %c0_i32 = arith.constant 0 : i32
    %c0_i32_0 = arith.constant 0 : i32
    %c0_i32_1 = arith.constant 0 : i32
    return %arg0, %c0_i32, %c0_i32_0 : i32, i32, i32
  }
  func.func @transform_1(%arg0: i32) -> (i32, i32) {
    %c0_i32 = arith.constant 0 : i32
    %c0_i32_0 = arith.constant 0 : i32
    %c0_i32_1 = arith.constant 0 : i32
    return %c0_i32, %c0_i32_0 : i32, i32
  }
  func.func @transform_2(%arg0: i32) -> (i32, i32) {
    %c0_i32 = arith.constant 0 : i32
    %c0_i32_0 = arith.constant 0 : i32
    %c0_i32_1 = arith.constant 0 : i32
    return %c0_i32, %c0_i32_0 : i32, i32
  }
  func.func @transform_3(%arg0: i32) -> (i32, i32) {
    %c0_i32 = arith.constant 0 : i32
    %c0_i32_0 = arith.constant 0 : i32
    %c0_i32_1 = arith.constant 0 : i32
    return %c0_i32, %c0_i32_0 : i32, i32
  }
  func.func @transform_4(%arg0: i32) -> (i32, i32) {
    %c0_i32 = arith.constant 0 : i32
    %c0_i32_0 = arith.constant 0 : i32
    %c0_i32_1 = arith.constant 0 : i32
    return %c0_i32, %c0_i32_0 : i32, i32
  }
  func.func @transform_5(%arg0: i32) -> (i32, i32, i32) {
    %c0_i32 = arith.constant 0 : i32
    %c0_i32_0 = arith.constant 0 : i32
    %c0_i32_1 = arith.constant 0 : i32
    return %arg0, %c0_i32, %c0_i32_0 : i32, i32, i32
  }
}

</mosaic_0001>

<llo_original>
// kernel: tpu_custom_call.1
$region0: #{tpu_custom_call.1}
  #allocation0 [shape = 'u32[]', space=smem, size = 0x4, offset = 0x4, fixed_abs, tag = 'smem constant byte address 0x4 - core index']
  #allocation1 [shape = 'u32[72,128]{1,0:T(1,128)}', space=vmem, size = 0x9000, scoped, tag = 'internal scratch']
  %s0 = inlined_call_operand.hbm [shape: f32[2,64,256], index: 0, kind: input, shape index: {}]
  %s1 = inlined_call_operand.vmem [shape: f32[4,64], index: 1, kind: input, shape index: {}]
  %s2 = inlined_call_operand.vmem [shape: f32[4,1], index: 2, kind: input, shape index: {}]
  %s3 = inlined_call_operand.vmem [shape: f32[64,4], index: 3, kind: input, shape index: {}]
  %s4 = inlined_call_operand.vmem [shape: f32[64,1], index: 4, kind: input, shape index: {}]
  %s5 = inlined_call_operand.hbm [shape: f32[2,64,256], index: 5, kind: output, shape index: {}]
  %s6 = sld [smem:[#allocation0]]
  $region57: #{tpu_custom_call.1} parent=0
    _
  %s8 = ssub.s32 1, %s6
  %s9 = scalar_select 0, %s8, %s6
  $region1: #{tpu_custom_call.1} parent=0
    #allocation2 [shape = 'u8[131072]{0}', space=vmem, size = 0x20000, scoped, tag = 'input window, operand 0']
    #allocation3 [shape = 's32[2]{0}', space=sflag, size = 0x8, scoped, tag = 'scoped memory for tpu_custom_call.1']
    #allocation4 [shape = 's32[2]{0}', space=sflag, size = 0x8, scoped, tag = 'scoped memory for tpu_custom_call.1']
    #allocation5 [shape = 'u8[131072]{0}', space=vmem, size = 0x20000, scoped, tag = 'output window, operand 0']
    %10 = vsyncpa [#allocation3], 0
    %s11 = scalar_lea.sflag [#allocation3], 1
    %12 = vsyncpa %s11, 0
    %13 = vsyncpa [#allocation4], 0
    %s14 = scalar_lea.sflag [#allocation4], 1
    %15 = vsyncpa %s14, 0
    loop: start=0, step=1, limit=4
    $region2: #{tpu_custom_call.1} parent=1 // loop_pre_header
      _
    $region3: #{tpu_custom_call.1} parent=1 // loop_header
      %s17 = sphi 0, %s21
      %p18 = scmp.ge.s32.totalorder %s17, 4
      %s27 = sphi 0, %s29
      %s30 = sphi 0, %s27
      %s31 = sphi 0, %s30
      %s47 = sphi 0, %s31
      %s51 = sphi 0, %s51
      %s53 = sphi 0, %s51
      %s54 = sphi 0, %s53
      %s68 = sphi 0, %s54
      %s72 = sphi 0, %s72
      %s74 = sphi 0, %s72
      %s75 = sphi 0, %s74
      %s89 = sphi 0, %s75
      %s93 = sphi 0, %s93
      %s95 = sphi 0, %s93
      %s96 = sphi 0, %s95
      %s110 = sphi 0, %s96
      %s114 = sphi 0, %s114
      %s116 = sphi 0, %s114
      %s117 = sphi 0, %s116
      %s131 = sphi 0, %s117
      %s137 = sphi 0, %s139
      %s140 = sphi 0, %s137
      %s141 = sphi 0, %s140
      %s157 = sphi 0, %s141
    $region4: #{tpu_custom_call.1} parent=1 // loop_header_branch
      %20 = sbr.rel (%p18) target = $region8
    $region5: #{tpu_custom_call.1} parent=1 // loop_body
      %s22 = ssub.s32 %s17, 1
      %s23 = ssub.s32 %s17, 2
      %s24 = sadd.s32 %s17, 1
      %s25 = ssub.s32 %s17, %s24
      %p26 = scmp.eq.s32.totalorder %s25, 0
      %s28 = sadd.s32 %s27, 1
      %s29 = scalar_select %p26, %s27, %s28
      %p32 = pneg %p26
      %p33 = scmp.eq.s32.totalorder %s17, 1
      %p34 = por %p32, %p33
      %p35 = scmp.ne.s32.totalorder %s27, %s30
      %p36 = scmp.eq.s32.totalorder %s17, 0
      %p37 = por %p35, %p36
      %p38 = scmp.ne.s32.totalorder %s27, %s30
      %p39 = scmp.eq.s32.totalorder %s22, 1
      %p40 = por %p38, %p39
      %p41 = scmp.ne.s32.totalorder %s30, %s31
      %p42 = scmp.eq.s32.totalorder %s22, 0
      %p43 = por %p41, %p42
      %p44 = scmp.ne.s32.totalorder %s30, %s31
      %p45 = scmp.eq.s32.totalorder %s23, 1
      %p46 = por %p44, %p45
      %p48 = scmp.ne.s32.totalorder %s31, %s47
      %p49 = scmp.eq.s32.totalorder %s23, 0
      %p50 = por %p48, %p49
      %s52 = sadd.s32 %s51, 1
      %p55 = scmp.eq.s32.totalorder %s17, 1
      %p56 = scmp.ne.s32.totalorder %s51, %s53
      %p57 = scmp.eq.s32.totalorder %s17, 0
      %p58 = por %p56, %p57
      %p59 = scmp.ne.s32.totalorder %s51, %s53
      %p60 = scmp.eq.s32.totalorder %s22, 1
      %p61 = por %p59, %p60
      %p62 = scmp.ne.s32.totalorder %s53, %s54
      %p63 = scmp.eq.s32.totalorder %s22, 0
      %p64 = por %p62, %p63
      %p65 = scmp.ne.s32.totalorder %s53, %s54
      %p66 = scmp.eq.s32.totalorder %s23, 1
      %p67 = por %p65, %p66
      %p69 = scmp.ne.s32.totalorder %s54, %s68
      %p70 = scmp.eq.s32.totalorder %s23, 0
      %p71 = por %p69, %p70
      %s73 = sadd.s32 %s72, 1
      %p76 = scmp.eq.s32.totalorder %s17, 1
      %p77 = scmp.ne.s32.totalorder %s72, %s74
      %p78 = scmp.eq.s32.totalorder %s17, 0
      %p79 = por %p77, %p78
      %p80 = scmp.ne.s32.totalorder %s72, %s74
      %p81 = scmp.eq.s32.totalorder %s22, 1
      %p82 = por %p80, %p81
      %p83 = scmp.ne.s32.totalorder %s74, %s75
      %p84 = scmp.eq.s32.totalorder %s22, 0
      %p85 = por %p83, %p84
      %p86 = scmp.ne.s32.totalorder %s74, %s75
      %p87 = scmp.eq.s32.totalorder %s23, 1
      %p88 = por %p86, %p87
      %p90 = scmp.ne.s32.totalorder %s75, %s89
      %p91 = scmp.eq.s32.totalorder %s23, 0
      %p92 = por %p90, %p91
      %s94 = sadd.s32 %s93, 1
      %p97 = scmp.eq.s32.totalorder %s17, 1
      %p98 = scmp.ne.s32.totalorder %s93, %s95
      %p99 = scmp.eq.s32.totalorder %s17, 0
      %p100 = por %p98, %p99
      %p101 = scmp.ne.s32.totalorder %s93, %s95
      %p102 = scmp.eq.s32.totalorder %s22, 1
      %p103 = por %p101, %p102
      %p104 = scmp.ne.s32.totalorder %s95, %s96
      %p105 = scmp.eq.s32.totalorder %s22, 0
      %p106 = por %p104, %p105
      %p107 = scmp.ne.s32.totalorder %s95, %s96
      %p108 = scmp.eq.s32.totalorder %s23, 1
      %p109 = por %p107, %p108
      %p111 = scmp.ne.s32.totalorder %s96, %s110
      %p112 = scmp.eq.s32.totalorder %s23, 0
      %p113 = por %p111, %p112
      %s115 = sadd.s32 %s114, 1
      %p118 = scmp.eq.s32.totalorder %s17, 1
      %p119 = scmp.ne.s32.totalorder %s114, %s116
      %p120 = scmp.eq.s32.totalorder %s17, 0
      %p121 = por %p119, %p120
      %p122 = scmp.ne.s32.totalorder %s114, %s116
      %p123 = scmp.eq.s32.totalorder %s22, 1
      %p124 = por %p122, %p123
      %p125 = scmp.ne.s32.totalorder %s116, %s117
      %p126 = scmp.eq.s32.totalorder %s22, 0
      %p127 = por %p125, %p126
      %p128 = scmp.ne.s32.totalorder %s116, %s117
      %p129 = scmp.eq.s32.totalorder %s23, 1
      %p130 = por %p128, %p129
      %p132 = scmp.ne.s32.totalorder %s117, %s131
      %p133 = scmp.eq.s32.totalorder %s23, 0
      %p134 = por %p132, %p133
      %s135 = ssub.s32 %s17, %s24
      %p136 = scmp.eq.s32.totalorder %s135, 0
      %s138 = sadd.s32 %s137, 1
      %s139 = scalar_select %p136, %s137, %s138
      %p142 = pneg %p136
      %p143 = scmp.eq.s32.totalorder %s17, 1
      %p144 = por %p142, %p143
      %p145 = scmp.ne.s32.totalorder %s137, %s140
      %p146 = scmp.eq.s32.totalorder %s17, 0
      %p147 = por %p145, %p146
      %p148 = scmp.ne.s32.totalorder %s137, %s140
      %p149 = scmp.eq.s32.totalorder %s22, 1
      %p150 = por %p148, %p149
      %p151 = scmp.ne.s32.totalorder %s140, %s141
      %p152 = scmp.eq.s32.totalorder %s22, 0
      %p153 = por %p151, %p152
      %p154 = scmp.ne.s32.totalorder %s140, %s141
      %p155 = scmp.eq.s32.totalorder %s23, 1
      %p156 = por %p154, %p155
      %p158 = scmp.ne.s32.totalorder %s141, %s157
      %p159 = scmp.eq.s32.totalorder %s23, 0
      %p160 = por %p158, %p159
      %p161 = scmp.le.s32.totalorder 1, %s17
      %p162 = scmp.lt.s32.totalorder %s17, 3
      %p163 = pnand %p161, %p162
      %p164 = pneg %p163
      // Predicated region
      $region9: #{tpu_custom_call.1} parent=5 // pred_check
        _
      $region10: #{tpu_custom_call.1} parent=5 // pred_check_branch
        %166 = sbr.rel (%p163) target = $region12
      $region11: #{tpu_custom_call.1} parent=5 // pred_region
        %s167 = ssub.s32 %s17, 1
        // Predicated region
        $region13: #{tpu_custom_call.1} parent=11 // pred_check
          %p168 = pneg %p64
        $region14: #{tpu_custom_call.1} parent=11 // pred_check_branch
          %170 = sbr.rel (%p168) target = $region16
        $region15: #{tpu_custom_call.1} parent=11 // pred_region
          _
        $region16: #{tpu_custom_call.1} parent=11 // pred_fallthru
          _
        // Predicated region
        $region17: #{tpu_custom_call.1} parent=11 // pred_check
          %p171 = pneg %p85
        $region18: #{tpu_custom_call.1} parent=11 // pred_check_branch
          %173 = sbr.rel (%p171) target = $region20
        $region19: #{tpu_custom_call.1} parent=11 // pred_region
          _
        $region20: #{tpu_custom_call.1} parent=11 // pred_fallthru
          _
        // Predicated region
        $region21: #{tpu_custom_call.1} parent=11 // pred_check
          %p174 = pneg %p106
        $region22: #{tpu_custom_call.1} parent=11 // pred_check_branch
          %176 = sbr.rel (%p174) target = $region24
        $region23: #{tpu_custom_call.1} parent=11 // pred_region
          _
        $region24: #{tpu_custom_call.1} parent=11 // pred_fallthru
          _
        // Predicated region
        $region25: #{tpu_custom_call.1} parent=11 // pred_check
          %p177 = pneg %p127
        $region26: #{tpu_custom_call.1} parent=11 // pred_check_branch
          %179 = sbr.rel (%p177) target = $region28
        $region27: #{tpu_custom_call.1} parent=11 // pred_region
          _
        $region28: #{tpu_custom_call.1} parent=11 // pred_fallthru
          _
      $region12: #{tpu_custom_call.1} parent=5 // pred_fallthru
        _
      %p180 = scmp.lt.s32.totalorder %s17, 2
      // Predicated region
      $region29: #{tpu_custom_call.1} parent=5 // pred_check
        %p181 = pneg %p180
      $region30: #{tpu_custom_call.1} parent=5 // pred_check_branch
        %183 = sbr.rel (%p181) target = $region32
      $region31: #{tpu_custom_call.1} parent=5 // pred_region
        // Predicated region
        $region33: #{tpu_custom_call.1} parent=31 // pred_check
          %p184 = pneg %p37
        $region34: #{tpu_custom_call.1} parent=31 // pred_check_branch
          %186 = sbr.rel (%p184) target = $region36
        $region35: #{tpu_custom_call.1} parent=31 // pred_region
          %s187 = sand.u32 %s27, 1
          %s188 = scalar_lea.sflag [#allocation3], %s187
          %s189 = sand.u32 %s27, 1
          %s190 = smul.addr %s189, 128
          %s191 = scalar_lea.vmem [#allocation2], %s190
          %193 = vsyncadd %s188, 0
          %s194 = smul.addr %s17, 16
          %s195 = smul.addr %s194, 8
          %s196 = scalar_lea.hbm %s0, %s195
          %s197 = sshll.u32 %s196, 4
          %s198 = int_to_ptr.hbm [resolvable:$true] %s197
          %s199 = sshll.u32 %s191, 4
          %s200 = int_to_ptr.vmem [resolvable:$true] %s199
          %205 = dma.hbm_to_vmem [thread:$0]  %s198, 2048, %s200, %s188, 256, 256, 16
        $region36: #{tpu_custom_call.1} parent=31 // pred_fallthru
          _
      $region32: #{tpu_custom_call.1} parent=5 // pred_fallthru
        _
      %p206 = scmp.le.s32.totalorder 1, %s17
      %p207 = scmp.lt.s32.totalorder %s17, 3
      %p208 = pnand %p206, %p207
      %p209 = pneg %p208
      // Predicated region
      $region37: #{tpu_custom_call.1} parent=5 // pred_check
        _
      $region38: #{tpu_custom_call.1} parent=5 // pred_check_branch
        %211 = sbr.rel (%p208) target = $region40
      $region39: #{tpu_custom_call.1} parent=5 // pred_region
        %s212 = ssub.s32 %s17, 1
        %s213 = sand.u32 %s30, 1
        %s214 = scalar_lea.sflag [#allocation3], %s213
        %s215 = sand.u32 %s30, 1
        %s216 = smul.addr %s215, 128
        %s217 = scalar_lea.vmem [#allocation2], %s216
        // Predicated region
        $region41: #{tpu_custom_call.1} parent=39 // pred_check
          %p218 = pneg %p43
        $region42: #{tpu_custom_call.1} parent=39 // pred_check_branch
          %220 = sbr.rel (%p218) target = $region44
        $region43: #{tpu_custom_call.1} parent=39 // pred_region
          %222 = dma.done %s214, 2048
        $region44: #{tpu_custom_call.1} parent=39 // pred_fallthru
          _
        %s223 = sand.u32 %s30, 1
        %s224 = scalar_lea.sflag [#allocation3], %s223
        %s225 = sand.u32 %s30, 1
        %s226 = smul.addr %s225, 128
        %s227 = scalar_lea.vmem [#allocation2], %s226
        %p228 = pneg %p43
        %p229 = pneg %p40
        %p230 = pneg %p64
        %p231 = pneg %p61
        %p232 = pneg %p85
        %p233 = pneg %p82
        %p234 = pneg %p106
        %p235 = pneg %p103
        %p236 = pneg %p127
        %p237 = pneg %p124
        %p238 = pneg %p153
        %p239 = pneg %p150
        %s240 = sand.u32 %s140, 1
        %s241 = scalar_lea.sflag [#allocation4], %s240
        %s242 = sand.u32 %s140, 1
        %s243 = smul.addr %s242, 128
        %s244 = scalar_lea.vmem [#allocation5], %s243
        %v245 = vld [vmem:[%s217] sm:$0xff]
        %v246 = vld [vmem:[%s217 + $0x8] sm:$0xff]
        %v247 = vld [vmem:[%s217 + $0x10] sm:$0xff]
        %v248 = vld [vmem:[%s217 + $0x18] sm:$0xff]
        %v249 = vld [vmem:[%s217 + $0x20] sm:$0xff]
        %v250 = vld [vmem:[%s217 + $0x28] sm:$0xff]
        %v251 = vld [vmem:[%s217 + $0x30] sm:$0xff]
        %v252 = vld [vmem:[%s217 + $0x38] sm:$0xff]
        %v253 = vld [vmem:[%s217 + $0x40] sm:$0xff]
        %v254 = vld [vmem:[%s217 + $0x48] sm:$0xff]
        %v255 = vld [vmem:[%s217 + $0x50] sm:$0xff]
        %v256 = vld [vmem:[%s217 + $0x58] sm:$0xff]
        %v257 = vld [vmem:[%s217 + $0x60] sm:$0xff]
        %v258 = vld [vmem:[%s217 + $0x68] sm:$0xff]
        %v259 = vld [vmem:[%s217 + $0x70] sm:$0xff]
        %v260 = vld [vmem:[%s217 + $0x78] sm:$0xff]
        %v261 = vadd.f32 %v245, %v246
        %262 = vadd.xlane.f32.xlu0 %v261
        %v263 = vpop.xlane.xlu0 %262
        %v264 = vadd.f32 %v247, %v248
        %265 = vadd.xlane.f32.xlu0 %v264
        %v266 = vpop.xlane.xlu0 %265
        %v267 = vadd.f32 %v249, %v250
        %268 = vadd.xlane.f32.xlu0 %v267
        %v269 = vpop.xlane.xlu0 %268
        %v270 = vadd.f32 %v251, %v252
        %271 = vadd.xlane.f32.xlu0 %v270
        %v272 = vpop.xlane.xlu0 %271
        %v273 = vadd.f32 %v253, %v254
        %274 = vadd.xlane.f32.xlu0 %v273
        %v275 = vpop.xlane.xlu0 %274
        %v276 = vadd.f32 %v255, %v256
        %277 = vadd.xlane.f32.xlu0 %v276
        %v278 = vpop.xlane.xlu0 %277
        %v279 = vadd.f32 %v257, %v258
        %280 = vadd.xlane.f32.xlu0 %v279
        %v281 = vpop.xlane.xlu0 %280
        %v282 = vadd.f32 %v259, %v260
        %283 = vadd.xlane.f32.xlu0 %v282
        %v284 = vpop.xlane.xlu0 %283
        %v285 = vrcp.pop 256.0
        %v286 = vmul.f32 256.0, %v285
        %v287 = vsub.f32 1.0, %v286
        %v288 = vmul.f32 %v285, %v287
        %v289 = vadd.f32 %v285, %v288
        %vm290 = vweird.f32 %v285
        %v291 = vsel %vm290, %v285, %v289
        %v292 = vmul.f32 %v263, %v291
        %v293 = vmul.f32 %v266, %v291
        %v294 = vmul.f32 %v269, %v291
        %v295 = vmul.f32 %v272, %v291
        %v296 = vmul.f32 %v275, %v291
        %v297 = vmul.f32 %v278, %v291
        %v298 = vmul.f32 %v281, %v291
        %v299 = vmul.f32 %v284, %v291
        %v300 = vld [vmem:[%s1] sm:$0xf]
        %v301 = vld [vmem:[%s2] sm:$0xf]
        %vm302 = vcmask 523264
        %v304 = vsel %vm302, %v300, 0
        %306 = vmatpush.msra.mxu0 0.0
        %307 = vmatpush.msra.mxu0 0.0
        %308 = vmatpush.msra.mxu0 0.0
        %309 = vmatpush.msra.mxu0 0.0
        %310 = vmatpush.msra.mxu0 0.0
        %311 = vmatpush.msra.mxu0 0.0
        %312 = vmatpush.msra.mxu0 0.0
        %313 = vmatpush.msra.mxu0 0.0
        %314 = vmatpush.msra.mxu0 %v299
        %315 = vmatpush.msra.mxu0 %v298
        %316 = vmatpush.msra.mxu0 %v297
        %317 = vmatpush.msra.mxu0 %v296
        %318 = vmatpush.msra.mxu0 %v295
        %319 = vmatpush.msra.mxu0 %v294
        %320 = vmatpush.msra.mxu0 %v293
        %321 = vmatpush.msra.mxu0 %v292
        %322 = vmatmul.f32.gmra.mxu0 %v304
        %v323 = vpop.f32.mrf.mxu0
        %v324 = vadd.f32 %v301, %v323
        %325 = vdwg.mxu0
        %v326 = vmax.f32 %v324, 0.0
        %v327 = vld [vmem:[%s3] sm:$0xff]
        %v328 = vld [vmem:[%s3 + $0x8] sm:$0xff]
        %v329 = vld [vmem:[%s3 + $0x10] sm:$0xff]
        %v330 = vld [vmem:[%s3 + $0x18] sm:$0xff]
        %v331 = vld [vmem:[%s3 + $0x20] sm:$0xff]
        %v332 = vld [vmem:[%s3 + $0x28] sm:$0xff]
        %v333 = vld [vmem:[%s3 + $0x30] sm:$0xff]
        %v334 = vld [vmem:[%s3 + $0x38] sm:$0xff]
        %v335 = vld [vmem:[%s4] sm:$0xff]
        %v336 = vld [vmem:[%s4 + $0x8] sm:$0xff]
        %v337 = vld [vmem:[%s4 + $0x10] sm:$0xff]
        %v338 = vld [vmem:[%s4 + $0x18] sm:$0xff]
        %v339 = vld [vmem:[%s4 + $0x20] sm:$0xff]
        %v340 = vld [vmem:[%s4 + $0x28] sm:$0xff]
        %v341 = vld [vmem:[%s4 + $0x30] sm:$0xff]
        %v342 = vld [vmem:[%s4 + $0x38] sm:$0xff]
        %vm343 = vcmask 31744
        %v345 = vsel %vm343, %v327, 0
        %v348 = vsel %vm343, %v328, 0
        %v351 = vsel %vm343, %v329, 0
        %v354 = vsel %vm343, %v330, 0
        %v357 = vsel %vm343, %v331, 0
        %v360 = vsel %vm343, %v332, 0
        %v363 = vsel %vm343, %v333, 0
        %v366 = vsel %vm343, %v334, 0
        %vm368 = vcmask 1043456
        %v370 = vsel %vm368, %v326, 0
        %372 = vmatpush.msra.mxu0 0.0
        %373 = vmatpush.msra.mxu0 0.0
        %374 = vmatpush.msra.mxu0 0.0
        %375 = vmatpush.msra.mxu0 0.0
        %376 = vmatpush.msra.mxu0 0.0
        %377 = vmatpush.msra.mxu0 0.0
        %378 = vmatpush.msra.mxu0 0.0
        %379 = vmatpush.msra.mxu0 0.0
        %380 = vmatpush.msra.mxu0 0.0
        %381 = vmatpush.msra.mxu0 0.0
        %382 = vmatpush.msra.mxu0 0.0
        %383 = vmatpush.msra.mxu0 0.0
        %384 = vmatpush.msra.mxu0 0.0
        %385 = vmatpush.msra.mxu0 0.0
        %386 = vmatpush.msra.mxu0 0.0
        %387 = vmatpush.msra.mxu0 %v370
        %388 = vmatmul.f32.gmra.mxu0 %v345
        %v389 = vpop.f32.mrf.mxu0
        %v390 = vadd.f32 %v335, %v389
        %391 = vmatmul.f32.gmra.mxu0 %v348
        %v392 = vpop.f32.mrf.mxu0
        %v393 = vadd.f32 %v336, %v392
        %394 = vmatmul.f32.gmra.mxu0 %v351
        %v395 = vpop.f32.mrf.mxu0
        %v396 = vadd.f32 %v337, %v395
        %397 = vmatmul.f32.gmra.mxu0 %v354
        %v398 = vpop.f32.mrf.mxu0
        %v399 = vadd.f32 %v338, %v398
        %400 = vmatmul.f32.gmra.mxu0 %v357
        %v401 = vpop.f32.mrf.mxu0
        %v402 = vadd.f32 %v339, %v401
        %403 = vmatmul.f32.gmra.mxu0 %v360
        %v404 = vpop.f32.mrf.mxu0
        %v405 = vadd.f32 %v340, %v404
        %406 = vmatmul.f32.gmra.mxu0 %v363
        %v407 = vpop.f32.mrf.mxu0
        %v408 = vadd.f32 %v341, %v407
        %409 = vmatmul.f32.gmra.mxu0 %v366
        %v410 = vpop.f32.mrf.mxu0
        %v411 = vadd.f32 %v342, %v410
        %412 = vdwg.mxu0
        %v413 = vxor.u32 %v390, 2147483648
        %v414 = vxor.u32 %v393, 2147483648
        %v415 = vxor.u32 %v396, 2147483648
        %v416 = vxor.u32 %v399, 2147483648
        %v417 = vxor.u32 %v402, 2147483648
        %v418 = vxor.u32 %v405, 2147483648
        %v419 = vxor.u32 %v408, 2147483648
        %v420 = vxor.u32 %v411, 2147483648
        %v421 = vmul.f32 %v413, 1.442695
        %v422 = vpow.pop %v421
        %v423 = vmul.f32 %v414, 1.442695
        %v424 = vpow.pop %v423
        %v425 = vmul.f32 %v415, 1.442695
        %v426 = vpow.pop %v425
        %v427 = vmul.f32 %v416, 1.442695
        %v428 = vpow.pop %v427
        %v429 = vmul.f32 %v417, 1.442695
        %v430 = vpow.pop %v429
        %v431 = vmul.f32 %v418, 1.442695
        %v432 = vpow.pop %v431
        %v433 = vmul.f32 %v419, 1.442695
        %v434 = vpow.pop %v433
        %v435 = vmul.f32 %v420, 1.442695
        %v436 = vpow.pop %v435
        %v437 = vadd.f32 %v422, 1.0
        %v438 = vadd.f32 %v424, 1.0
        %v439 = vadd.f32 %v426, 1.0
        %v440 = vadd.f32 %v428, 1.0
        %v441 = vadd.f32 %v430, 1.0
        %v442 = vadd.f32 %v432, 1.0
        %v443 = vadd.f32 %v434, 1.0
        %v444 = vadd.f32 %v436, 1.0
        %v445 = vrcp.pop %v437
        %v446 = vmul.f32 %v437, %v445
        %v447 = vsub.f32 1.0, %v446
        %v448 = vmul.f32 %v445, %v447
        %v449 = vadd.f32 %v445, %v448
        %vm450 = vweird.f32 %v437
        %vm451 = vweird.f32 %v445
        %vm452 = vmor %vm450, %vm451
        %v453 = vsel %vm452, %v445, %v449
        %v454 = vand.u32 2147483647, %v437
        %vm455 = vcmp.eq.f32.partialorder %v454, 8.507059e+37
        %v456 = vand.u32 %v437, 2147483648
        %v457 = vor.u32 1.1754944e-38, %v456
        %v458 = vsel %vm455, %v457, %v453
        %v459 = vmul.f32 1.0, %v458
        %v460 = vrcp.pop %v438
        %v461 = vmul.f32 %v438, %v460
        %v462 = vsub.f32 1.0, %v461
        %v463 = vmul.f32 %v460, %v462
        %v464 = vadd.f32 %v460, %v463
        %vm465 = vweird.f32 %v438
        %vm466 = vweird.f32 %v460
        %vm467 = vmor %vm465, %vm466
        %v468 = vsel %vm467, %v460, %v464
        %v469 = vand.u32 2147483647, %v438
        %vm470 = vcmp.eq.f32.partialorder %v469, 8.507059e+37
        %v471 = vand.u32 %v438, 2147483648
        %v472 = vor.u32 1.1754944e-38, %v471
        %v473 = vsel %vm470, %v472, %v468
        %v474 = vmul.f32 1.0, %v473
        %v475 = vrcp.pop %v439
        %v476 = vmul.f32 %v439, %v475
        %v477 = vsub.f32 1.0, %v476
        %v478 = vmul.f32 %v475, %v477
        %v479 = vadd.f32 %v475, %v478
        %vm480 = vweird.f32 %v439
        %vm481 = vweird.f32 %v475
        %vm482 = vmor %vm480, %vm481
        %v483 = vsel %vm482, %v475, %v479
        %v484 = vand.u32 2147483647, %v439
        %vm485 = vcmp.eq.f32.partialorder %v484, 8.507059e+37
        %v486 = vand.u32 %v439, 2147483648
        %v487 = vor.u32 1.1754944e-38, %v486
        %v488 = vsel %vm485, %v487, %v483
        %v489 = vmul.f32 1.0, %v488
        %v490 = vrcp.pop %v440
        %v491 = vmul.f32 %v440, %v490
        %v492 = vsub.f32 1.0, %v491
        %v493 = vmul.f32 %v490, %v492
        %v494 = vadd.f32 %v490, %v493
        %vm495 = vweird.f32 %v440
        %vm496 = vweird.f32 %v490
        %vm497 = vmor %vm495, %vm496
        %v498 = vsel %vm497, %v490, %v494
        %v499 = vand.u32 2147483647, %v440
        %vm500 = vcmp.eq.f32.partialorder %v499, 8.507059e+37
        %v501 = vand.u32 %v440, 2147483648
        %v502 = vor.u32 1.1754944e-38, %v501
        %v503 = vsel %vm500, %v502, %v498
        %v504 = vmul.f32 1.0, %v503
        %v505 = vrcp.pop %v441
        %v506 = vmul.f32 %v441, %v505
        %v507 = vsub.f32 1.0, %v506
        %v508 = vmul.f32 %v505, %v507
        %v509 = vadd.f32 %v505, %v508
        %vm510 = vweird.f32 %v441
        %vm511 = vweird.f32 %v505
        %vm512 = vmor %vm510, %vm511
        %v513 = vsel %vm512, %v505, %v509
        %v514 = vand.u32 2147483647, %v441
        %vm515 = vcmp.eq.f32.partialorder %v514, 8.507059e+37
        %v516 = vand.u32 %v441, 2147483648
        %v517 = vor.u32 1.1754944e-38, %v516
        %v518 = vsel %vm515, %v517, %v513
        %v519 = vmul.f32 1.0, %v518
        %v520 = vrcp.pop %v442
        %v521 = vmul.f32 %v442, %v520
        %v522 = vsub.f32 1.0, %v521
        %v523 = vmul.f32 %v520, %v522
        %v524 = vadd.f32 %v520, %v523
        %vm525 = vweird.f32 %v442
        %vm526 = vweird.f32 %v520
        %vm527 = vmor %vm525, %vm526
        %v528 = vsel %vm527, %v520, %v524
        %v529 = vand.u32 2147483647, %v442
        %vm530 = vcmp.eq.f32.partialorder %v529, 8.507059e+37
        %v531 = vand.u32 %v442, 2147483648
        %v532 = vor.u32 1.1754944e-38, %v531
        %v533 = vsel %vm530, %v532, %v528
        %v534 = vmul.f32 1.0, %v533
        %v535 = vrcp.pop %v443
        %v536 = vmul.f32 %v443, %v535
        %v537 = vsub.f32 1.0, %v536
        %v538 = vmul.f32 %v535, %v537
        %v539 = vadd.f32 %v535, %v538
        %vm540 = vweird.f32 %v443
        %vm541 = vweird.f32 %v535
        %vm542 = vmor %vm540, %vm541
        %v543 = vsel %vm542, %v535, %v539
        %v544 = vand.u32 2147483647, %v443
        %vm545 = vcmp.eq.f32.partialorder %v544, 8.507059e+37
        %v546 = vand.u32 %v443, 2147483648
        %v547 = vor.u32 1.1754944e-38, %v546
        %v548 = vsel %vm545, %v547, %v543
        %v549 = vmul.f32 1.0, %v548
        %v550 = vrcp.pop %v444
        %v551 = vmul.f32 %v444, %v550
        %v552 = vsub.f32 1.0, %v551
        %v553 = vmul.f32 %v550, %v552
        %v554 = vadd.f32 %v550, %v553
        %vm555 = vweird.f32 %v444
        %vm556 = vweird.f32 %v550
        %vm557 = vmor %vm555, %vm556
        %v558 = vsel %vm557, %v550, %v554
        %v559 = vand.u32 2147483647, %v444
        %vm560 = vcmp.eq.f32.partialorder %v559, 8.507059e+37
        %v561 = vand.u32 %v444, 2147483648
        %v562 = vor.u32 1.1754944e-38, %v561
        %v563 = vsel %vm560, %v562, %v558
        %v564 = vmul.f32 1.0, %v563
        %566 = vset.pattern.permute.xlu0 0
        %567 = vperm.xlu0 %566, %v459
        %v568 = vpop.permute.xlu0 %567
        %571 = vset.pattern.permute.xlu0 0
        %572 = vperm.xlu0 %571, %v474
        %v573 = vpop.permute.xlu0 %572
        %576 = vset.pattern.permute.xlu0 0
        %577 = vperm.xlu0 %576, %v489
        %v578 = vpop.permute.xlu0 %577
        %581 = vset.pattern.permute.xlu0 0
        %582 = vperm.xlu0 %581, %v504
        %v583 = vpop.permute.xlu0 %582
        %586 = vset.pattern.permute.xlu0 0
        %587 = vperm.xlu0 %586, %v519
        %v588 = vpop.permute.xlu0 %587
        %591 = vset.pattern.permute.xlu0 0
        %592 = vperm.xlu0 %591, %v534
        %v593 = vpop.permute.xlu0 %592
        %596 = vset.pattern.permute.xlu0 0
        %597 = vperm.xlu0 %596, %v549
        %v598 = vpop.permute.xlu0 %597
        %601 = vset.pattern.permute.xlu0 0
        %602 = vperm.xlu0 %601, %v564
        %v603 = vpop.permute.xlu0 %602
        %v605 = vmul.f32 %v245, %v568
        %v606 = vmul.f32 %v246, %v568
        %v607 = vmul.f32 %v247, %v573
        %v608 = vmul.f32 %v248, %v573
        %v609 = vmul.f32 %v249, %v578
        %v610 = vmul.f32 %v250, %v578
        %v611 = vmul.f32 %v251, %v583
        %v612 = vmul.f32 %v252, %v583
        %v613 = vmul.f32 %v253, %v588
        %v614 = vmul.f32 %v254, %v588
        %v615 = vmul.f32 %v255, %v593
        %v616 = vmul.f32 %v256, %v593
        %v617 = vmul.f32 %v257, %v598
        %v618 = vmul.f32 %v258, %v598
        %v619 = vmul.f32 %v259, %v603
        %v620 = vmul.f32 %v260, %v603
        %621 = vst [vmem:[%s244] sm:$0xff] %v605
        %622 = vst [vmem:[%s244 + $0x8] sm:$0xff] %v606
        %623 = vst [vmem:[%s244 + $0x10] sm:$0xff] %v607
        %624 = vst [vmem:[%s244 + $0x18] sm:$0xff] %v608
        %625 = vst [vmem:[%s244 + $0x20] sm:$0xff] %v609
        %626 = vst [vmem:[%s244 + $0x28] sm:$0xff] %v610
        %627 = vst [vmem:[%s244 + $0x30] sm:$0xff] %v611
        %628 = vst [vmem:[%s244 + $0x38] sm:$0xff] %v612
        %629 = vst [vmem:[%s244 + $0x40] sm:$0xff] %v613
        %630 = vst [vmem:[%s244 + $0x48] sm:$0xff] %v614
        %631 = vst [vmem:[%s244 + $0x50] sm:$0xff] %v615
        %632 = vst [vmem:[%s244 + $0x58] sm:$0xff] %v616
        %633 = vst [vmem:[%s244 + $0x60] sm:$0xff] %v617
        %634 = vst [vmem:[%s244 + $0x68] sm:$0xff] %v618
        %635 = vst [vmem:[%s244 + $0x70] sm:$0xff] %v619
        %636 = vst [vmem:[%s244 + $0x78] sm:$0xff] %v620
        %s637 = sand.u32 %s140, 1
        %s638 = scalar_lea.sflag [#allocation4], %s637
        %s639 = sand.u32 %s140, 1
        %s640 = smul.addr %s639, 128
        %s641 = scalar_lea.vmem [#allocation5], %s640
        // Predicated region
        $region45: #{tpu_custom_call.1} parent=39 // pred_check
          %p642 = pneg %p150
        $region46: #{tpu_custom_call.1} parent=39 // pred_check_branch
          %644 = sbr.rel (%p642) target = $region48
        $region47: #{tpu_custom_call.1} parent=39 // pred_region
          %646 = vsyncadd %s638, 0
          %s647 = smul.addr %s22, 16
          %s648 = smul.addr %s647, 8
          %s649 = scalar_lea.hbm %s5, %s648
          %s650 = sshll.u32 %s641, 4
          %s651 = int_to_ptr.vmem [resolvable:$true] %s650
          %s652 = sshll.u32 %s649, 4
          %s653 = int_to_ptr.hbm [resolvable:$true] %s652
          %658 = dma.vmem_to_hbm [thread:$0]  %s651, 2048, %s653, %s638, 256, 256, 16
        $region48: #{tpu_custom_call.1} parent=39 // pred_fallthru
          _
      $region40: #{tpu_custom_call.1} parent=5 // pred_fallthru
        _
      %p659 = scmp.le.s32.totalorder 2, %s17
      // Predicated region
      $region49: #{tpu_custom_call.1} parent=5 // pred_check
        %p660 = pneg %p659
      $region50: #{tpu_custom_call.1} parent=5 // pred_check_branch
        %662 = sbr.rel (%p660) target = $region52
      $region51: #{tpu_custom_call.1} parent=5 // pred_region
        %s663 = ssub.s32 %s17, 2
        // Predicated region
        $region53: #{tpu_custom_call.1} parent=51 // pred_check
          %p664 = pneg %p156
        $region54: #{tpu_custom_call.1} parent=51 // pred_check_branch
          %666 = sbr.rel (%p664) target = $region56
        $region55: #{tpu_custom_call.1} parent=51 // pred_region
          %s667 = sand.u32 %s141, 1
          %s668 = scalar_lea.sflag [#allocation4], %s667
          %s669 = sand.u32 %s141, 1
          %s670 = smul.addr %s669, 128
          %s671 = scalar_lea.vmem [#allocation5], %s670
          %673 = dma.done %s668, 2048
        $region56: #{tpu_custom_call.1} parent=51 // pred_fallthru
          _
      $region52: #{tpu_custom_call.1} parent=5 // pred_fallthru
        _
    $region6: #{tpu_custom_call.1} parent=1 // loop_footer
      %s21 = sadd.s32 1, %s17
    $region7: #{tpu_custom_call.1} parent=1 // loop_footer_branch
      %16 = sbr.rel target = $region3
    $region8: #{tpu_custom_call.1} parent=1 // loop_exit
      _
    %674 = vsyncpa [#allocation3], 1
    %s675 = scalar_lea.sflag [#allocation3], 1
    %676 = vsyncpa %s675, 1
    %677 = vsyncpa [#allocation4], 1
    %s678 = scalar_lea.sflag [#allocation4], 1
    %679 = vsyncpa %s678, 1

</llo_original>
